<compile_context>
chip_gen: v7x
topology: tpu7x:2x2x1
jax: 0.10.0
libtpu: 0.0.40
codegen_flags: <defaults>
</compile_context>

<pallas_src>
import functools

import jax
import jax.numpy as jnp
from jax import lax
from jax.experimental import pallas as pl
from jax.experimental.pallas import tpu as pltpu

LANE = 128            # vreg lane width
MAX_BATCH_TILE = 1024 # rows per grid step (fits comfortably in 32 MiB scoped VMEM)


def _round_up(x, m):
    return (x + m - 1) // m * m


def _lrelu(h):
    return jnp.where(h >= 0.0, h, 0.2 * h)


def _encoder_kernel(x_ref, se_ref, eps_ref,
                    w1x_ref, w1s_ref, b1_ref,
                    w2_ref, b2_ref,
                    wh_ref, bh_ref, esel_ref,
                    out_ref, *, latent_dim):
    """fc1 -> lrelu -> fc2 -> lrelu -> packed (mu|logvar) head -> reparameterize.

    Single lane-dense output: lanes [0:L)=mu, [L:2L)=logvar, [2L:3L)=z.
    """
    L = latent_dim
    x = x_ref[...].astype(jnp.bfloat16)              # (TB, D0)
    se = se_ref[...].astype(jnp.bfloat16)            # (TB, Dse)

    # fc1 with fused concat: cat([x, se]) @ W1 == x @ W1_x + se @ W1_se
    h1 = (jnp.dot(x, w1x_ref[...], preferred_element_type=jnp.float32)
          + jnp.dot(se, w1s_ref[...], preferred_element_type=jnp.float32)
          + b1_ref[...])
    h1 = _lrelu(h1)                                  # (TB, H1P) f32, padded cols 0

    h2 = _lrelu(jnp.dot(h1.astype(jnp.bfloat16), w2_ref[...],
                        preferred_element_type=jnp.float32) + b2_ref[...])

    # Packed head: lanes [0:L) = mu, [L:2L) = logvar, rest 0.
    head = jnp.dot(h2.astype(jnp.bfloat16), wh_ref[...],
                   preferred_element_type=jnp.float32) + bh_ref[...]

    # eps (TB, L) f32 -> lanes [0:L) of a (TB, 128) register via selector matmul.
    eps0 = jnp.dot(eps_ref[...], esel_ref[...], preferred_element_type=jnp.float32)

    # Align logvar lanes onto the mu lanes (rotate by -L == +LANE-L), exp on EUP.
    std0 = jnp.exp(0.5 * pltpu.roll(head, shift=LANE - L, axis=1))  # std at [0:L)
    z0 = eps0 * std0 + head                                         # z   at [0:L)
    z2 = pltpu.roll(z0, shift=2 * L, axis=1)                        # z   at [2L:3L)

    lane = lax.broadcasted_iota(jnp.int32, head.shape, 1)
    out_ref[...] = jnp.where(lane < 2 * L, head, z2)   # one lane-dense store


@functools.partial(jax.jit, static_argnames=("latent_dim",))
def encoder_forward(x, se, eps, p, *, latent_dim):
    """Pallas-backed Encoder.forward.

    x:   (B, enc_hidden_dims[0]) f32
    se:  (B, latent_dim) f32 or None (non-conditional models)
    eps: (B, latent_dim) f32 N(0,1) reparameterization noise
    p:   packed/padded parameter dict from pad_params()
    Returns (z, mu, logvar), each (B, latent_dim) f32.
    """
    L = latent_dim
    if se is None:
        se = jnp.zeros((x.shape[0], p["w1_se"].shape[0]), x.dtype)

    B, Dx = x.shape
    Dse = se.shape[1]
    H1P = p["w1_x"].shape[1]
    H2P = p["w2"].shape[1]

    # Batch tile: full extent for tiny B; otherwise >= 2 "parallel" steps so the
    # grid can shard across v7x's two TensorCores, capped for VMEM.
    if B <= 8:
        TB = B
    else:
        TB = min(MAX_BATCH_TILE, _round_up(pl.cdiv(B, 2), 8))
    nb = pl.cdiv(B, TB)

    row = lambda ncols: pl.BlockSpec((TB, ncols), lambda i: (i, 0))   # per-tile rows
    fixed = lambda shape: pl.BlockSpec(shape, lambda i: (0, 0))       # VMEM-resident

    nbytes = lambda a: int(a.size) * a.dtype.itemsize
    flops = 2 * B * (Dx * H1P + Dse * H1P + H1P * H2P + H2P * LANE + L * LANE)
    bytes_accessed = (nbytes(x) + nbytes(se) + nbytes(eps)
                      + sum(nbytes(v) for v in p.values()) + 4 * B * LANE)
    cost = pl.CostEstimate(flops=flops, transcendentals=B * LANE,
                           bytes_accessed=bytes_accessed)

    out = pl.pallas_call(
        functools.partial(_encoder_kernel, latent_dim=L),
        out_shape=jax.ShapeDtypeStruct((B, LANE), jnp.float32),
        grid_spec=pltpu.PrefetchScalarGridSpec(
            num_scalar_prefetch=0,
            grid=(nb,),
            in_specs=[
                row(Dx), row(Dse), row(L),
                fixed(p["w1_x"].shape), fixed(p["w1_se"].shape), fixed(p["b1"].shape),
                fixed(p["w2"].shape), fixed(p["b2"].shape),
                fixed(p["w_head"].shape), fixed(p["b_head"].shape),
                fixed(p["eps_sel"].shape),
            ],
            out_specs=row(LANE),
        ),
        compiler_params=pltpu.CompilerParams(
            dimension_semantics=("parallel",),
            vmem_limit_bytes=32 * 1024 * 1024),
        cost_estimate=cost,
    )(x, se, eps,
      p["w1_x"], p["w1_se"], p["b1"],
      p["w2"], p["b2"],
      p["w_head"], p["b_head"], p["eps_sel"])

    # Unpack the single lane-dense output (cheap slices).
    mu = out[:, :L]
    logvar = out[:, L:2 * L]
    z = out[:, 2 * L:3 * L]
    return z, mu, logvar


# ----------------------------- parameters -----------------------------------

def init_params(key, config):
    """Mirror weight_init: Linear W ~ N(0, 0.02); biases keep PyTorch default."""
    hidden = config["enc_hidden_dims"]
    L = config["latent_dim"]
    use_se = config["model_type"] in ("cvae", "cvaegan")
    in_dim = hidden[0] + (L if use_se else 0)
    H1, H2 = hidden[-1], 2 * L

    ks = jax.random.split(key, 8)

    def linear(kw, kb, fan_in, fan_out):
        w = 0.02 * jax.random.normal(kw, (fan_in, fan_out), dtype=jnp.float32)
        bound = fan_in ** -0.5
        b = jax.random.uniform(kb, (fan_out,), jnp.float32, -bound, bound)
        return w, b

    w1, b1 = linear(ks[0], ks[1], in_dim, H1)
    w2, b2 = linear(ks[2], ks[3], H1, H2)
    wmu, bmu = linear(ks[4], ks[5], H2, L)
    wlv, blv = linear(ks[6], ks[7], H2, L)
    return {"w1": w1, "b1": b1, "w2": w2, "b2": b2,
            "w_mu": wmu, "b_mu": bmu, "w_lv": wlv, "b_lv": blv}


def pad_params(params, config):
    """One-time packing: split W1 for the fused concat, pack mu/logvar heads
    into one 128-lane weight, zero-pad to lane width, cast weights to bf16."""
    hidden = config["enc_hidden_dims"]
    L = config["latent_dim"]
    use_se = config["model_type"] in ("cvae", "cvaegan")
    D0 = hidden[0]
    H1, H2 = hidden[-1], 2 * L
    H1P, H2P = _round_up(H1, LANE), _round_up(H2, LANE)
    assert 3 * L <= LANE, "packed mu|logvar|z output needs 3*latent_dim <= 128"
    # TODO(synk): for latent_dim > 42 fall back to separate lane-padded outputs.

    def pad_cols(a, n):
        return jnp.pad(a, ((0, 0), (0, n - a.shape[1])))

    w1 = params["w1"]
    w1_x = w1[:D0]
    w1_se = w1[D0:] if use_se else jnp.zeros((L, H1), jnp.float32)

    # Packed head weight: mu columns in lanes [0:L), logvar in [L:2L).
    w_head = jnp.zeros((H2, LANE), jnp.float32)
    w_head = w_head.at[:, :L].set(params["w_mu"])
    w_head = w_head.at[:, L:2 * L].set(params["w_lv"])
    w_head = jnp.pad(w_head, ((0, H2P - H2), (0, 0)))
    b_head = jnp.zeros((1, LANE), jnp.float32)
    b_head = b_head.at[0, :L].set(params["b_mu"])
    b_head = b_head.at[0, L:2 * L].set(params["b_lv"])

    bf16 = jnp.bfloat16
    return {
        "w1_x": pad_cols(w1_x, H1P).astype(bf16),                               # (D0, 128)
        "w1_se": pad_cols(w1_se, H1P).astype(bf16),                             # (L, 128)
        "b1": pad_cols(params["b1"][None, :], H1P),                             # (1, 128) f32
        "w2": jnp.pad(params["w2"], ((0, H1P - H1), (0, H2P - H2))).astype(bf16),  # (128,128)
        "b2": pad_cols(params["b2"][None, :], H2P),                             # (1, 128) f32
        "w_head": w_head.astype(bf16),                                          # (128, 128)
        "b_head": b_head,                                                       # (1, 128) f32
        "eps_sel": jnp.eye(L, LANE, dtype=jnp.float32),                         # (L, 128)
    }


# ----------------------------- reference ------------------------------------

def reference_forward(x, se, eps, params, model_type):
    """Pure-JAX reference, mirroring the kernel's bf16 matmul operands."""
    bf = lambda a: a.astype(jnp.bfloat16).astype(jnp.float32)
    if model_type in ("cvae", "cvaegan"):
        x = jnp.concatenate((x, se), axis=-1)
    h = _lrelu(bf(x) @ bf(params["w1"]) + params["b1"])
    h = _lrelu(bf(h) @ bf(params["w2"]) + params["b2"])
    mu = bf(h) @ bf(params["w_mu"]) + params["b_mu"]
    logvar = bf(h) @ bf(params["w_lv"]) + params["b_lv"]
    z = eps * jnp.exp(0.5 * logvar) + mu
    return z, mu, logvar


if __name__ == "__main__":
    # config = {'model_type': 'cvaegan', 'enc_hidden_dims': [64, 32], 'latent_dim': 8}
    config = {"model_type": "cvaegan", "enc_hidden_dims": [64, 32], "latent_dim": 8}
    L = config["latent_dim"]

    key = jax.random.PRNGKey(0)
    kp, kdata = jax.random.split(key)
    params = init_params(kp, config)
    pparams = pad_params(params, config)

    # B=4: tiny single-tile path.  B=20: multi-step grid with a partial tail tile.
    for B in (4, 20):
        kx, kse, keps = jax.random.split(jax.random.fold_in(kdata, B), 3)
        x = jax.random.normal(kx, (B, config["enc_hidden_dims"][0]), dtype=jnp.float32)
        se = jax.random.normal(kse, (B, L), dtype=jnp.float32)
        eps = jax.random.normal(keps, (B, L), dtype=jnp.float32)  # reparam noise

        z, mu, logvar = encoder_forward(x, se, eps, pparams, latent_dim=L)
        z, mu, logvar = jax.block_until_ready((z, mu, logvar))

        z_r, mu_r, lv_r = reference_forward(x, se, eps, params, config["model_type"])
        assert z.shape == (B, L) and mu.shape == (B, L) and logvar.shape == (B, L)
        assert jnp.allclose(mu, mu_r, atol=1e-4, rtol=1e-4), f"mu mismatch (B={B})"
        assert jnp.allclose(logvar, lv_r, atol=1e-4, rtol=1e-4), f"logvar mismatch (B={B})"
        assert jnp.allclose(z, z_r, atol=1e-4, rtol=1e-4), f"z mismatch (B={B})"

    print("KERNEL_OK")
</pallas_src>

<mosaic_0001>
module attributes {stable_mosaic.version = 11 : i64} {
  func.func @_encoder_kernel(%arg0: i32, %arg1: memref<4x64xf32, #tpu.memory_space<vmem>>, %arg2: memref<4x8xf32, #tpu.memory_space<vmem>>, %arg3: memref<4x8xf32, #tpu.memory_space<vmem>>, %arg4: memref<64x128xbf16, #tpu.memory_space<vmem>>, %arg5: memref<8x128xbf16, #tpu.memory_space<vmem>>, %arg6: memref<1x128xf32, #tpu.memory_space<vmem>>, %arg7: memref<128x128xbf16, #tpu.memory_space<vmem>>, %arg8: memref<1x128xf32, #tpu.memory_space<vmem>>, %arg9: memref<128x128xbf16, #tpu.memory_space<vmem>>, %arg10: memref<1x128xf32, #tpu.memory_space<vmem>>, %arg11: memref<8x128xf32, #tpu.memory_space<vmem>>, %arg12: memref<4x128xf32, #tpu.memory_space<vmem>>) attributes {dimension_semantics = [#tpu.dimension_semantics<parallel>], iteration_bounds = array<i64: 1>, scalar_prefetch = 0 : i64, scratch_operands = 0 : i64, tpu.core_type = #tpu.core_type<tc>, window_params = [{transform_indices = @transform_0, window_bounds = array<i64: 4, 64>}, {transform_indices = @transform_1, window_bounds = array<i64: 4, 8>}, {transform_indices = @transform_2, window_bounds = array<i64: 4, 8>}, {pipeline_mode = #tpu.pipeline_mode<synchronous>, transform_indices = @transform_3, window_bounds = array<i64: 64, 128>}, {pipeline_mode = #tpu.pipeline_mode<synchronous>, transform_indices = @transform_4, window_bounds = array<i64: 8, 128>}, {pipeline_mode = #tpu.pipeline_mode<synchronous>, transform_indices = @transform_5, window_bounds = array<i64: 1, 128>}, {pipeline_mode = #tpu.pipeline_mode<synchronous>, transform_indices = @transform_6, window_bounds = array<i64: 128, 128>}, {pipeline_mode = #tpu.pipeline_mode<synchronous>, transform_indices = @transform_7, window_bounds = array<i64: 1, 128>}, {pipeline_mode = #tpu.pipeline_mode<synchronous>, transform_indices = @transform_8, window_bounds = array<i64: 128, 128>}, {pipeline_mode = #tpu.pipeline_mode<synchronous>, transform_indices = @transform_9, window_bounds = array<i64: 1, 128>}, {pipeline_mode = #tpu.pipeline_mode<synchronous>, transform_indices = @transform_10, window_bounds = array<i64: 8, 128>}, {transform_indices = @transform_11, window_bounds = array<i64: 4, 128>}]} {
    %c0 = arith.constant 0 : index
    %c0_0 = arith.constant 0 : index
    %0 = vector.load %arg1[%c0, %c0_0] : memref<4x64xf32, #tpu.memory_space<vmem>>, vector<4x64xf32>
    %1 = arith.truncf %0 : vector<4x64xf32> to vector<4x64xbf16>
    %c0_1 = arith.constant 0 : index
    %c0_2 = arith.constant 0 : index
    %2 = vector.load %arg2[%c0_1, %c0_2] : memref<4x8xf32, #tpu.memory_space<vmem>>, vector<4x8xf32>
    %3 = arith.truncf %2 : vector<4x8xf32> to vector<4x8xbf16>
    %c0_3 = arith.constant 0 : index
    %c0_4 = arith.constant 0 : index
    %4 = vector.load %arg4[%c0_3, %c0_4] : memref<64x128xbf16, #tpu.memory_space<vmem>>, vector<64x128xbf16>
    %cst = arith.constant dense<0.000000e+00> : vector<4x128xf32>
    %5 = tpu.matmul %1, %4, %cst {dimension_numbers = #tpu.dot_dimension_numbers<[1], [0], [0], [1], [0, 0, 1, 1], [], []>} : vector<4x64xbf16>, vector<64x128xbf16>, vector<4x128xf32> -> vector<4x128xf32>
    %c0_5 = arith.constant 0 : index
    %c0_6 = arith.constant 0 : index
    %6 = vector.load %arg5[%c0_5, %c0_6] : memref<8x128xbf16, #tpu.memory_space<vmem>>, vector<8x128xbf16>
    %cst_7 = arith.constant dense<0.000000e+00> : vector<4x128xf32>
    %7 = tpu.matmul %3, %6, %cst_7 {dimension_numbers = #tpu.dot_dimension_numbers<[1], [0], [0], [1], [0, 0, 1, 1], [], []>} : vector<4x8xbf16>, vector<8x128xbf16>, vector<4x128xf32> -> vector<4x128xf32>
    %8 = arith.addf %5, %7 : vector<4x128xf32>
    %c0_8 = arith.constant 0 : index
    %c0_9 = arith.constant 0 : index
    %9 = vector.load %arg6[%c0_8, %c0_9] : memref<1x128xf32, #tpu.memory_space<vmem>>, vector<1x128xf32>
    %10 = vector.broadcast %9 : vector<1x128xf32> to vector<4x128xf32>
    %11 = arith.addf %8, %10 : vector<4x128xf32>
    %cst_10 = arith.constant 0.000000e+00 : f32
    %12 = vector.broadcast %cst_10 : f32 to vector<4x128xf32>
    %13 = arith.cmpf oge, %11, %12 : vector<4x128xf32>
    %cst_11 = arith.constant 2.000000e-01 : f32
    %14 = vector.broadcast %cst_11 : f32 to vector<4x128xf32>
    %15 = arith.mulf %14, %11 : vector<4x128xf32>
    %16 = arith.select %13, %11, %15 : vector<4x128xi1>, vector<4x128xf32>
    %17 = arith.truncf %16 : vector<4x128xf32> to vector<4x128xbf16>
    %c0_12 = arith.constant 0 : index
    %c0_13 = arith.constant 0 : index
    %18 = vector.load %arg7[%c0_12, %c0_13] : memref<128x128xbf16, #tpu.memory_space<vmem>>, vector<128x128xbf16>
    %cst_14 = arith.constant dense<0.000000e+00> : vector<4x128xf32>
    %19 = tpu.matmul %17, %18, %cst_14 {dimension_numbers = #tpu.dot_dimension_numbers<[1], [0], [0], [1], [0, 0, 1, 1], [], []>} : vector<4x128xbf16>, vector<128x128xbf16>, vector<4x128xf32> -> vector<4x128xf32>
    %c0_15 = arith.constant 0 : index
    %c0_16 = arith.constant 0 : index
    %20 = vector.load %arg8[%c0_15, %c0_16] : memref<1x128xf32, #tpu.memory_space<vmem>>, vector<1x128xf32>
    %21 = vector.broadcast %20 : vector<1x128xf32> to vector<4x128xf32>
    %22 = arith.addf %19, %21 : vector<4x128xf32>
    %cst_17 = arith.constant 0.000000e+00 : f32
    %23 = vector.broadcast %cst_17 : f32 to vector<4x128xf32>
    %24 = arith.cmpf oge, %22, %23 : vector<4x128xf32>
    %cst_18 = arith.constant 2.000000e-01 : f32
    %25 = vector.broadcast %cst_18 : f32 to vector<4x128xf32>
    %26 = arith.mulf %25, %22 : vector<4x128xf32>
    %27 = arith.select %24, %22, %26 : vector<4x128xi1>, vector<4x128xf32>
    %28 = arith.truncf %27 : vector<4x128xf32> to vector<4x128xbf16>
    %c0_19 = arith.constant 0 : index
    %c0_20 = arith.constant 0 : index
    %29 = vector.load %arg9[%c0_19, %c0_20] : memref<128x128xbf16, #tpu.memory_space<vmem>>, vector<128x128xbf16>
    %cst_21 = arith.constant dense<0.000000e+00> : vector<4x128xf32>
    %30 = tpu.matmul %28, %29, %cst_21 {dimension_numbers = #tpu.dot_dimension_numbers<[1], [0], [0], [1], [0, 0, 1, 1], [], []>} : vector<4x128xbf16>, vector<128x128xbf16>, vector<4x128xf32> -> vector<4x128xf32>
    %c0_22 = arith.constant 0 : index
    %c0_23 = arith.constant 0 : index
    %31 = vector.load %arg10[%c0_22, %c0_23] : memref<1x128xf32, #tpu.memory_space<vmem>>, vector<1x128xf32>
    %32 = vector.broadcast %31 : vector<1x128xf32> to vector<4x128xf32>
    %33 = arith.addf %30, %32 : vector<4x128xf32>
    %c0_24 = arith.constant 0 : index
    %c0_25 = arith.constant 0 : index
    %34 = vector.load %arg3[%c0_24, %c0_25] : memref<4x8xf32, #tpu.memory_space<vmem>>, vector<4x8xf32>
    %c0_26 = arith.constant 0 : index
    %c0_27 = arith.constant 0 : index
    %35 = vector.load %arg11[%c0_26, %c0_27] : memref<8x128xf32, #tpu.memory_space<vmem>>, vector<8x128xf32>
    %cst_28 = arith.constant dense<0.000000e+00> : vector<4x128xf32>
    %36 = tpu.matmul %34, %35, %cst_28 {dimension_numbers = #tpu.dot_dimension_numbers<[1], [0], [0], [1], [0, 0, 1, 1], [], []>} : vector<4x8xf32>, vector<8x128xf32>, vector<4x128xf32> -> vector<4x128xf32>
    %c120_i32 = arith.constant 120 : i32
    %37 = tpu.dynamic_rotate %33 by %c120_i32 dim 1 : vector<4x128xf32>, i32 -> vector<4x128xf32>
    %cst_29 = arith.constant 5.000000e-01 : f32
    %38 = vector.broadcast %cst_29 : f32 to vector<4x128xf32>
    %39 = arith.mulf %38, %37 : vector<4x128xf32>
    %40 = math.exp %39 : vector<4x128xf32>
    %41 = arith.mulf %36, %40 : vector<4x128xf32>
    %42 = arith.addf %41, %33 : vector<4x128xf32>
    %c16_i32 = arith.constant 16 : i32
    %43 = tpu.dynamic_rotate %42 by %c16_i32 dim 1 : vector<4x128xf32>, i32 -> vector<4x128xf32>
    %44 = tpu.iota {dimensions = array<i32: 1>} : vector<4x128xi32>
    %c16_i32_30 = arith.constant 16 : i32
    %45 = vector.broadcast %c16_i32_30 : i32 to vector<4x128xi32>
    %46 = arith.cmpi slt, %44, %45 : vector<4x128xi32>
    %47 = arith.select %46, %33, %43 : vector<4x128xi1>, vector<4x128xf32>
    %c0_31 = arith.constant 0 : index
    %c0_32 = arith.constant 0 : index
    %48 = vector.load %arg12[%c0_31, %c0_32] : memref<4x128xf32, #tpu.memory_space<vmem>>, vector<4x128xf32>
    tpu.vector_store %arg12[%c0_31, %c0_32], %47 {strides = array<i32>} : memref<4x128xf32, #tpu.memory_space<vmem>>, vector<4x128xf32>,
    return
  }
  func.func @transform_0(%arg0: i32) -> (i32, i32) {
    %c0_i32 = arith.constant 0 : i32
    %c0_i32_0 = arith.constant 0 : i32
    return %arg0, %c0_i32 : i32, i32
  }
  func.func @transform_1(%arg0: i32) -> (i32, i32) {
    %c0_i32 = arith.constant 0 : i32
    %c0_i32_0 = arith.constant 0 : i32
    return %arg0, %c0_i32 : i32, i32
  }
  func.func @transform_2(%arg0: i32) -> (i32, i32) {
    %c0_i32 = arith.constant 0 : i32
    %c0_i32_0 = arith.constant 0 : i32
    return %arg0, %c0_i32 : i32, i32
  }
  func.func @transform_3(%arg0: i32) -> (i32, i32) {
    %c0_i32 = arith.constant 0 : i32
    %c0_i32_0 = arith.constant 0 : i32
    %c0_i32_1 = arith.constant 0 : i32
    return %c0_i32, %c0_i32_0 : i32, i32
  }
  func.func @transform_4(%arg0: i32) -> (i32, i32) {
    %c0_i32 = arith.constant 0 : i32
    %c0_i32_0 = arith.constant 0 : i32
    %c0_i32_1 = arith.constant 0 : i32
    return %c0_i32, %c0_i32_0 : i32, i32
  }
  func.func @transform_5(%arg0: i32) -> (i32, i32) {
    %c0_i32 = arith.constant 0 : i32
    %c0_i32_0 = arith.constant 0 : i32
    %c0_i32_1 = arith.constant 0 : i32
    return %c0_i32, %c0_i32_0 : i32, i32
  }
  func.func @transform_6(%arg0: i32) -> (i32, i32) {
    %c0_i32 = arith.constant 0 : i32
    %c0_i32_0 = arith.constant 0 : i32
    %c0_i32_1 = arith.constant 0 : i32
    return %c0_i32, %c0_i32_0 : i32, i32
  }
  func.func @transform_7(%arg0: i32) -> (i32, i32) {
    %c0_i32 = arith.constant 0 : i32
    %c0_i32_0 = arith.constant 0 : i32
    %c0_i32_1 = arith.constant 0 : i32
    return %c0_i32, %c0_i32_0 : i32, i32
  }
  func.func @transform_8(%arg0: i32) -> (i32, i32) {
    %c0_i32 = arith.constant 0 : i32
    %c0_i32_0 = arith.constant 0 : i32
    %c0_i32_1 = arith.constant 0 : i32
    return %c0_i32, %c0_i32_0 : i32, i32
  }
  func.func @transform_9(%arg0: i32) -> (i32, i32) {
    %c0_i32 = arith.constant 0 : i32
    %c0_i32_0 = arith.constant 0 : i32
    %c0_i32_1 = arith.constant 0 : i32
    return %c0_i32, %c0_i32_0 : i32, i32
  }
  func.func @transform_10(%arg0: i32) -> (i32, i32) {
    %c0_i32 = arith.constant 0 : i32
    %c0_i32_0 = arith.constant 0 : i32
    %c0_i32_1 = arith.constant 0 : i32
    return %c0_i32, %c0_i32_0 : i32, i32
  }
  func.func @transform_11(%arg0: i32) -> (i32, i32) {
    %c0_i32 = arith.constant 0 : i32
    %c0_i32_0 = arith.constant 0 : i32
    return %arg0, %c0_i32 : i32, i32
  }
}

</mosaic_0001>

<llo_original>
// kernel: encoder_forward.1
$region0: #{encoder_forward.1}
  #allocation0 [shape = 'u32[]', space=smem, size = 0x4, offset = 0x4, fixed_abs, tag = 'smem constant byte address 0x4 - core index']
  #allocation1 [shape = 'u32[144,128]{1,0:T(1,128)}', space=vmem, size = 0x12000, scoped, tag = 'internal scratch']
  %s0 = inlined_call_operand.hbm [shape: f32[4,64], index: 0, kind: input, shape index: {}]
  %s1 = inlined_call_operand.hbm [shape: f32[4,8], index: 1, kind: input, shape index: {}]
  %s2 = inlined_call_operand.vmem [shape: f32[4,8], index: 2, kind: input, shape index: {}]
  %s3 = inlined_call_operand.hbm [shape: bf16[64,128], index: 3, kind: input, shape index: {}]
  %s4 = inlined_call_operand.vmem [shape: bf16[8,128], index: 4, kind: input, shape index: {}]
  %s5 = inlined_call_operand.vmem [shape: f32[1,128], index: 5, kind: input, shape index: {}]
  %s6 = inlined_call_operand.hbm [shape: bf16[128,128], index: 6, kind: input, shape index: {}]
  %s7 = inlined_call_operand.vmem [shape: f32[1,128], index: 7, kind: input, shape index: {}]
  %s8 = inlined_call_operand.hbm [shape: bf16[128,128], index: 8, kind: input, shape index: {}]
  %s9 = inlined_call_operand.hbm [shape: f32[1,128], index: 9, kind: input, shape index: {}]
  %s10 = inlined_call_operand.vmem [shape: f32[8,128], index: 10, kind: input, shape index: {}]
  %s11 = inlined_call_operand.vmem [shape: f32[4,128], index: 11, kind: output, shape index: {}]
  %s12 = sld [smem:[#allocation0]]
  $region78: #{encoder_forward.1} parent=0
    _
  %s14 = ssub.s32 1, %s12
  %s15 = scalar_select 0, %s14, %s12
  $region1: #{encoder_forward.1} parent=0
    #allocation2 [shape = 'u8[2048]{0}', space=vmem, size = 0x800, scoped, tag = 'input window, operand 0, single buffered']
    #allocation3 [shape = 's32[1]{0}', space=sflag, size = 0x4, scoped, tag = 'scoped memory for encoder_forward.1']
    #allocation4 [shape = 'u8[2048]{0}', space=vmem, size = 0x800, scoped, tag = 'input window, operand 1, single buffered']
    #allocation5 [shape = 's32[1]{0}', space=sflag, size = 0x4, scoped, tag = 'scoped memory for encoder_forward.1']
    #allocation6 [shape = 'u8[16384]{0}', space=vmem, size = 0x4000, scoped, tag = 'input window, operand 3, single buffered']
    #allocation7 [shape = 'u8[32768]{0}', space=vmem, size = 0x8000, scoped, tag = 'input window, operand 6, single buffered']
    #allocation8 [shape = 's32[1]{0}', space=sflag, size = 0x4, scoped, tag = 'scoped memory for encoder_forward.1']
    #allocation9 [shape = 'u8[32768]{0}', space=vmem, size = 0x8000, scoped, tag = 'input window, operand 8, single buffered']
    #allocation10 [shape = 'u8[512]{0}', space=vmem, size = 0x400, scoped, tag = 'input window, operand 9, single buffered']
    #allocation11 [shape = 's32[1]{0}', space=sflag, size = 0x4, scoped, tag = 'scoped memory for encoder_forward.1']
    %16 = vsyncpa [#allocation3], 0
    %17 = vsyncpa [#allocation5], 0
    %18 = vsyncpa [#allocation8], 0
    %19 = vsyncpa [#allocation11], 0
    // Predicated region
    $region2: #{encoder_forward.1} parent=1 // pred_check
      _
    $region3: #{encoder_forward.1} parent=1 // pred_check_branch
      %21 = sbr.rel (0) target = $region5
    $region4: #{encoder_forward.1} parent=1 // pred_region
      %s23 = ssub.s32 64, 64
      %24 = vsyncadd [#allocation3], %s23
      %s26 = sshll.u32 [#allocation2], 4
      %s27 = int_to_ptr.vmem [resolvable:$true] %s26
      %29 = dma.hbm_to_vmem [thread:$0]  %s0, 64, %s27, [#allocation3]
    $region5: #{encoder_forward.1} parent=1 // pred_fallthru
      _
    // Predicated region
    $region6: #{encoder_forward.1} parent=1 // pred_check
      _
    $region7: #{encoder_forward.1} parent=1 // pred_check_branch
      %31 = sbr.rel (0) target = $region9
    $region8: #{encoder_forward.1} parent=1 // pred_region
      %s33 = ssub.s32 64, 64
      %34 = vsyncadd [#allocation5], %s33
      %s36 = sshll.u32 [#allocation4], 4
      %s37 = int_to_ptr.vmem [resolvable:$true] %s36
      %39 = dma.hbm_to_vmem [thread:$0]  %s1, 64, %s37, [#allocation5]
    $region9: #{encoder_forward.1} parent=1 // pred_fallthru
      _
    // Predicated region
    $region10: #{encoder_forward.1} parent=1 // pred_check
      _
    $region11: #{encoder_forward.1} parent=1 // pred_check_branch
      %41 = sbr.rel (0) target = $region13
    $region12: #{encoder_forward.1} parent=1 // pred_region
      _
    $region13: #{encoder_forward.1} parent=1 // pred_fallthru
      _
    // Predicated region
    $region14: #{encoder_forward.1} parent=1 // pred_check
      _
    $region15: #{encoder_forward.1} parent=1 // pred_check_branch
      %43 = sbr.rel (0) target = $region17
    $region16: #{encoder_forward.1} parent=1 // pred_region
      %s45 = ssub.s32 512, 512
      %46 = vsyncadd [#allocation5], %s45
      %s47 = sshll.u32 [#allocation6], 4
      %s48 = int_to_ptr.vmem [resolvable:$true] %s47
      %53 = dma.hbm_to_vmem [thread:$0]  %s3, 512, %s48, [#allocation5], 64, 64, 4
    $region17: #{encoder_forward.1} parent=1 // pred_fallthru
      _
    // Predicated region
    $region18: #{encoder_forward.1} parent=1 // pred_check
      _
    $region19: #{encoder_forward.1} parent=1 // pred_check_branch
      %55 = sbr.rel (0) target = $region21
    $region20: #{encoder_forward.1} parent=1 // pred_region
      _
    $region21: #{encoder_forward.1} parent=1 // pred_fallthru
      _
    // Predicated region
    $region22: #{encoder_forward.1} parent=1 // pred_check
      _
    $region23: #{encoder_forward.1} parent=1 // pred_check_branch
      %57 = sbr.rel (0) target = $region25
    $region24: #{encoder_forward.1} parent=1 // pred_region
      _
    $region25: #{encoder_forward.1} parent=1 // pred_fallthru
      _
    // Predicated region
    $region26: #{encoder_forward.1} parent=1 // pred_check
      _
    $region27: #{encoder_forward.1} parent=1 // pred_check_branch
      %59 = sbr.rel (0) target = $region29
    $region28: #{encoder_forward.1} parent=1 // pred_region
      %s61 = ssub.s32 1024, 1024
      %62 = vsyncadd [#allocation8], %s61
      %s63 = sshll.u32 [#allocation7], 4
      %s64 = int_to_ptr.vmem [resolvable:$true] %s63
      %69 = dma.hbm_to_vmem [thread:$0]  %s6, 1024, %s64, [#allocation8], 64, 64, 4
    $region29: #{encoder_forward.1} parent=1 // pred_fallthru
      _
    // Predicated region
    $region30: #{encoder_forward.1} parent=1 // pred_check
      _
    $region31: #{encoder_forward.1} parent=1 // pred_check_branch
      %71 = sbr.rel (0) target = $region33
    $region32: #{encoder_forward.1} parent=1 // pred_region
      _
    $region33: #{encoder_forward.1} parent=1 // pred_fallthru
      _
    // Predicated region
    $region34: #{encoder_forward.1} parent=1 // pred_check
      _
    $region35: #{encoder_forward.1} parent=1 // pred_check_branch
      %73 = sbr.rel (0) target = $region37
    $region36: #{encoder_forward.1} parent=1 // pred_region
      %s75 = ssub.s32 1024, 1024
      %76 = vsyncadd [#allocation8], %s75
      %s77 = sshll.u32 [#allocation9], 4
      %s78 = int_to_ptr.vmem [resolvable:$true] %s77
      %83 = dma.hbm_to_vmem [thread:$0]  %s8, 1024, %s78, [#allocation8], 64, 64, 4
    $region37: #{encoder_forward.1} parent=1 // pred_fallthru
      _
    // Predicated region
    $region38: #{encoder_forward.1} parent=1 // pred_check
      _
    $region39: #{encoder_forward.1} parent=1 // pred_check_branch
      %85 = sbr.rel (0) target = $region41
    $region40: #{encoder_forward.1} parent=1 // pred_region
      %s87 = ssub.s32 16, 16
      %88 = vsyncadd [#allocation11], %s87
      %s90 = sshll.u32 [#allocation10], 4
      %s91 = int_to_ptr.vmem [resolvable:$true] %s90
      %93 = dma.hbm_to_vmem [thread:$0]  %s9, 16, %s91, [#allocation11]
    $region41: #{encoder_forward.1} parent=1 // pred_fallthru
      _
    // Predicated region
    $region42: #{encoder_forward.1} parent=1 // pred_check
      _
    $region43: #{encoder_forward.1} parent=1 // pred_check_branch
      %95 = sbr.rel (0) target = $region45
    $region44: #{encoder_forward.1} parent=1 // pred_region
      _
    $region45: #{encoder_forward.1} parent=1 // pred_fallthru
      _
    // Predicated region
    $region46: #{encoder_forward.1} parent=1 // pred_check
      _
    $region47: #{encoder_forward.1} parent=1 // pred_check_branch
      %97 = sbr.rel (0) target = $region49
    $region48: #{encoder_forward.1} parent=1 // pred_region
      %98 = dma.done [#allocation3], 64
    $region49: #{encoder_forward.1} parent=1 // pred_fallthru
      _
    // Predicated region
    $region50: #{encoder_forward.1} parent=1 // pred_check
      _
    $region51: #{encoder_forward.1} parent=1 // pred_check_branch
      %100 = sbr.rel (0) target = $region53
    $region52: #{encoder_forward.1} parent=1 // pred_region
      %101 = dma.done [#allocation5], 64
    $region53: #{encoder_forward.1} parent=1 // pred_fallthru
      _
    // Predicated region
    $region54: #{encoder_forward.1} parent=1 // pred_check
      _
    $region55: #{encoder_forward.1} parent=1 // pred_check_branch
      %103 = sbr.rel (0) target = $region57
    $region56: #{encoder_forward.1} parent=1 // pred_region
      %104 = dma.done [#allocation5], 512
    $region57: #{encoder_forward.1} parent=1 // pred_fallthru
      _
    // Predicated region
    $region58: #{encoder_forward.1} parent=1 // pred_check
      _
    $region59: #{encoder_forward.1} parent=1 // pred_check_branch
      %106 = sbr.rel (0) target = $region61
    $region60: #{encoder_forward.1} parent=1 // pred_region
      %107 = dma.done [#allocation8], 1024
    $region61: #{encoder_forward.1} parent=1 // pred_fallthru
      _
    // Predicated region
    $region62: #{encoder_forward.1} parent=1 // pred_check
      _
    $region63: #{encoder_forward.1} parent=1 // pred_check_branch
      %109 = sbr.rel (0) target = $region65
    $region64: #{encoder_forward.1} parent=1 // pred_region
      %110 = dma.done [#allocation8], 1024
    $region65: #{encoder_forward.1} parent=1 // pred_fallthru
      _
    // Predicated region
    $region66: #{encoder_forward.1} parent=1 // pred_check
      _
    $region67: #{encoder_forward.1} parent=1 // pred_check_branch
      %112 = sbr.rel (0) target = $region69
    $region68: #{encoder_forward.1} parent=1 // pred_region
      %113 = dma.done [#allocation11], 16
    $region69: #{encoder_forward.1} parent=1 // pred_fallthru
      _
    %v115 = vld [vmem:[#allocation2] sm:$0xf]
    %v116 = vpack.c.bf16 %v115, %v115
    %v117 = vld [vmem:[#allocation4] sm:$0xf]
    %v118 = vpack.c.bf16 %v117, %v117
    %v119 = vld [vmem:[#allocation6] sm:$0xf]
    %v120 = vld [vmem:[#allocation6 + $0x4] sm:$0xf]
    %v121 = vld [vmem:[#allocation6 + $0x8] sm:$0xf]
    %v122 = vld [vmem:[#allocation6 + $0xc] sm:$0xf]
    %v123 = vld [vmem:[#allocation6 + $0x10] sm:$0xf]
    %v124 = vld [vmem:[#allocation6 + $0x14] sm:$0xf]
    %v125 = vld [vmem:[#allocation6 + $0x18] sm:$0xf]
    %v126 = vld [vmem:[#allocation6 + $0x1c] sm:$0xf]
    %v127 = vld [vmem:[%s4] sm:$0xf]
    %vm128 = vcmask 64512
    %v130 = vsel %vm128, %v118, 0
    %vm132 = vcmask 1043456
    %v134 = vsel %vm132, %v127, 0
    %136 = vmatprep.subr.bf16.mxu0 0
    %137 = vmatpush1.bf16.msra.mxu0 %v134
    %138 = vmatprep.subr.bf16.mxu0 0
    %139 = vmatpush1.bf16.msra.mxu0 0
    %140 = vmatprep.subr.bf16.mxu0 0
    %141 = vmatpush1.bf16.msra.mxu0 0
    %142 = vmatprep.subr.bf16.mxu0 0
    %143 = vmatpush1.bf16.msra.mxu0 0
    %144 = vmatprep.subr.bf16.mxu0 0
    %145 = vmatpush1.bf16.msra.mxu0 0
    %146 = vmatprep.subr.bf16.mxu0 0
    %147 = vmatpush1.bf16.msra.mxu0 0
    %148 = vmatprep.subr.bf16.mxu0 0
    %149 = vmatpush1.bf16.msra.mxu0 0
    %150 = vmatprep.subr.bf16.mxu0 0
    %151 = vmatpush1.bf16.msra.mxu0 0
    %152 = vmatprep.subr.bf16.mxu0 0
    %153 = vmatpush1.bf16.msra.mxu0 0
    %154 = vmatprep.subr.bf16.mxu0 0
    %155 = vmatpush1.bf16.msra.mxu0 0
    %156 = vmatprep.subr.bf16.mxu0 0
    %157 = vmatpush1.bf16.msra.mxu0 0
    %158 = vmatprep.subr.bf16.mxu0 0
    %159 = vmatpush1.bf16.msra.mxu0 0
    %160 = vmatprep.subr.bf16.mxu0 0
    %161 = vmatpush1.bf16.msra.mxu0 0
    %162 = vmatprep.subr.bf16.mxu0 0
    %163 = vmatpush1.bf16.msra.mxu0 0
    %164 = vmatprep.subr.bf16.mxu0 0
    %165 = vmatpush1.bf16.msra.mxu0 0
    %166 = vmatprep.subr.bf16.mxu0 0
    %167 = vmatpush1.bf16.msra.mxu0 0
    %168 = vmatprep.mubr.bf16.mxu0 0
    %169 = vmatmul.mubr.bf16.gmra.mrb[0].mxu0 %v130
    %v170 = vpop.f32.mrb[0].mxu0
    %v171 = vadd.f32 0.0, %v170
    %v172 = vpop.f32.mrb[0].mxu0
    %v173 = vpop.f32.mrb[0].mxu0
    %v174 = vpop.f32.mrb[0].mxu0
    %175 = vdwg.mxu0
    %v184 = vunpack.c.l.b16 %v119
    %v185 = vunpack.c.l.b16 %v120
    %v186 = vunpack.c.l.b16 %v121
    %v187 = vunpack.c.l.b16 %v122
    %v188 = vunpack.c.l.b16 %v123
    %v189 = vunpack.c.l.b16 %v124
    %v190 = vunpack.c.l.b16 %v125
    %v191 = vunpack.c.l.b16 %v126
    %v192 = vpack.c.b16 %v185, %v184
    %v193 = vpack.c.b16 %v187, %v186
    %v194 = vpack.c.b16 %v189, %v188
    %v195 = vpack.c.b16 %v191, %v190
    %vm200 = vcmask 523264
    %v202 = vsel %vm200, %v116, 0
    %204 = vmatprep.subr.bf16.mxu0 0
    %205 = vmatpush1.bf16.msra.mxu0 %v192
    %206 = vmatprep.subr.bf16.mxu0 0
    %207 = vmatpush1.bf16.msra.mxu0 %v193
    %208 = vmatprep.subr.bf16.mxu0 0
    %209 = vmatpush1.bf16.msra.mxu0 %v194
    %210 = vmatprep.subr.bf16.mxu0 0
    %211 = vmatpush1.bf16.msra.mxu0 %v195
    %212 = vmatprep.subr.bf16.mxu0 0
    %213 = vmatpush1.bf16.msra.mxu0 0
    %214 = vmatprep.subr.bf16.mxu0 0
    %215 = vmatpush1.bf16.msra.mxu0 0
    %216 = vmatprep.subr.bf16.mxu0 0
    %217 = vmatpush1.bf16.msra.mxu0 0
    %218 = vmatprep.subr.bf16.mxu0 0
    %219 = vmatpush1.bf16.msra.mxu0 0
    %220 = vmatprep.subr.bf16.mxu0 0
    %221 = vmatpush1.bf16.msra.mxu0 0
    %222 = vmatprep.subr.bf16.mxu0 0
    %223 = vmatpush1.bf16.msra.mxu0 0
    %224 = vmatprep.subr.bf16.mxu0 0
    %225 = vmatpush1.bf16.msra.mxu0 0
    %226 = vmatprep.subr.bf16.mxu0 0
    %227 = vmatpush1.bf16.msra.mxu0 0
    %228 = vmatprep.subr.bf16.mxu0 0
    %229 = vmatpush1.bf16.msra.mxu0 0
    %230 = vmatprep.subr.bf16.mxu0 0
    %231 = vmatpush1.bf16.msra.mxu0 0
    %232 = vmatprep.subr.bf16.mxu0 0
    %233 = vmatpush1.bf16.msra.mxu0 0
    %234 = vmatprep.subr.bf16.mxu0 0
    %235 = vmatpush1.bf16.msra.mxu0 0
    %236 = vmatprep.mubr.bf16.mxu0 0
    %237 = vmatmul.mubr.bf16.gmra.mrb[0].mxu0 %v202
    %v238 = vpop.f32.mrb[0].mxu0
    %v239 = vadd.f32 %v171, %v238
    %v240 = vpop.f32.mrb[0].mxu0
    %v241 = vpop.f32.mrb[0].mxu0
    %v242 = vpop.f32.mrb[0].mxu0
    %243 = vdwg.mxu0
    %v244 = vld [vmem:[%s5] sm:$0x1]
    %v246 = vlaneseq
    %v247 = vshrl.u32 %v246, 7
    %v248 = vsub.s32 0, %v247
    %v249 = vrot.slane %v244, %v248
    %v251 = vadd.f32 %v239, %v249
    %vm252 = vcmp.ge.f32.partialorder %v251, 0.0
    %v253 = vmul.f32 %v251, 0.2
    %v254 = vsel %vm252, %v251, %v253
    %v255 = vpack.c.bf16 %v254, %v254
    %v256 = vld [vmem:[#allocation7] sm:$0xf]
    %v257 = vld [vmem:[#allocation7 + $0x4] sm:$0xf]
    %v258 = vld [vmem:[#allocation7 + $0x8] sm:$0xf]
    %v259 = vld [vmem:[#allocation7 + $0xc] sm:$0xf]
    %v260 = vld [vmem:[#allocation7 + $0x10] sm:$0xf]
    %v261 = vld [vmem:[#allocation7 + $0x14] sm:$0xf]
    %v262 = vld [vmem:[#allocation7 + $0x18] sm:$0xf]
    %v263 = vld [vmem:[#allocation7 + $0x1c] sm:$0xf]
    %v264 = vld [vmem:[#allocation7 + $0x20] sm:$0xf]
    %v265 = vld [vmem:[#allocation7 + $0x24] sm:$0xf]
    %v266 = vld [vmem:[#allocation7 + $0x28] sm:$0xf]
    %v267 = vld [vmem:[#allocation7 + $0x2c] sm:$0xf]
    %v268 = vld [vmem:[#allocation7 + $0x30] sm:$0xf]
    %v269 = vld [vmem:[#allocation7 + $0x34] sm:$0xf]
    %v270 = vld [vmem:[#allocation7 + $0x38] sm:$0xf]
    %v271 = vld [vmem:[#allocation7 + $0x3c] sm:$0xf]
    %v272 = vld [vmem:[%s7] sm:$0x1]
    %v274 = vlaneseq
    %v275 = vshrl.u32 %v274, 7
    %v276 = vsub.s32 0, %v275
    %v277 = vrot.slane %v272, %v276
    %v295 = vunpack.c.l.b16 %v256
    %v296 = vunpack.c.l.b16 %v257
    %v297 = vunpack.c.l.b16 %v258
    %v298 = vunpack.c.l.b16 %v259
    %v299 = vunpack.c.l.b16 %v260
    %v300 = vunpack.c.l.b16 %v261
    %v301 = vunpack.c.l.b16 %v262
    %v302 = vunpack.c.l.b16 %v263
    %v303 = vunpack.c.l.b16 %v264
    %v304 = vunpack.c.l.b16 %v265
    %v305 = vunpack.c.l.b16 %v266
    %v306 = vunpack.c.l.b16 %v267
    %v307 = vunpack.c.l.b16 %v268
    %v308 = vunpack.c.l.b16 %v269
    %v309 = vunpack.c.l.b16 %v270
    %v310 = vunpack.c.l.b16 %v271
    %v311 = vpack.c.b16 %v296, %v295
    %v312 = vpack.c.b16 %v298, %v297
    %v313 = vpack.c.b16 %v300, %v299
    %v314 = vpack.c.b16 %v302, %v301
    %v315 = vpack.c.b16 %v304, %v303
    %v316 = vpack.c.b16 %v306, %v305
    %v317 = vpack.c.b16 %v308, %v307
    %v318 = vpack.c.b16 %v310, %v309
    %327 = vmatprep.subr.bf16.mxu0 0
    %328 = vmatpush1.bf16.msra.mxu0 %v311
    %329 = vmatprep.subr.bf16.mxu0 0
    %330 = vmatpush1.bf16.msra.mxu0 %v312
    %331 = vmatprep.subr.bf16.mxu0 0
    %332 = vmatpush1.bf16.msra.mxu0 %v313
    %333 = vmatprep.subr.bf16.mxu0 0
    %334 = vmatpush1.bf16.msra.mxu0 %v314
    %335 = vmatprep.subr.bf16.mxu0 0
    %336 = vmatpush1.bf16.msra.mxu0 %v315
    %337 = vmatprep.subr.bf16.mxu0 0
    %338 = vmatpush1.bf16.msra.mxu0 %v316
    %339 = vmatprep.subr.bf16.mxu0 0
    %340 = vmatpush1.bf16.msra.mxu0 %v317
    %341 = vmatprep.subr.bf16.mxu0 0
    %342 = vmatpush1.bf16.msra.mxu0 %v318
    %343 = vmatprep.subr.bf16.mxu0 0
    %344 = vmatpush1.bf16.msra.mxu0 0
    %345 = vmatprep.subr.bf16.mxu0 0
    %346 = vmatpush1.bf16.msra.mxu0 0
    %347 = vmatprep.subr.bf16.mxu0 0
    %348 = vmatpush1.bf16.msra.mxu0 0
    %349 = vmatprep.subr.bf16.mxu0 0
    %350 = vmatpush1.bf16.msra.mxu0 0
    %351 = vmatprep.subr.bf16.mxu0 0
    %352 = vmatpush1.bf16.msra.mxu0 0
    %353 = vmatprep.subr.bf16.mxu0 0
    %354 = vmatpush1.bf16.msra.mxu0 0
    %355 = vmatprep.subr.bf16.mxu0 0
    %356 = vmatpush1.bf16.msra.mxu0 0
    %357 = vmatprep.subr.bf16.mxu0 0
    %358 = vmatpush1.bf16.msra.mxu0 0
    %359 = vmatprep.mubr.bf16.mxu0 0
    %360 = vmatmul.mubr.bf16.gmra.mrb[0].mxu0 %v255
    %v361 = vpop.f32.mrb[0].mxu0
    %v362 = vadd.f32 %v277, %v361
    %v363 = vpop.f32.mrb[0].mxu0
    %v364 = vpop.f32.mrb[0].mxu0
    %v365 = vpop.f32.mrb[0].mxu0
    %366 = vdwg.mxu0
    %vm367 = vcmp.ge.f32.partialorder %v362, 0.0
    %v368 = vmul.f32 %v362, 0.2
    %v369 = vsel %vm367, %v362, %v368
    %v370 = vpack.c.bf16 %v369, %v369
    %v371 = vld [vmem:[#allocation9] sm:$0xf]
    %v372 = vld [vmem:[#allocation9 + $0x4] sm:$0xf]
    %v373 = vld [vmem:[#allocation9 + $0x8] sm:$0xf]
    %v374 = vld [vmem:[#allocation9 + $0xc] sm:$0xf]
    %v375 = vld [vmem:[#allocation9 + $0x10] sm:$0xf]
    %v376 = vld [vmem:[#allocation9 + $0x14] sm:$0xf]
    %v377 = vld [vmem:[#allocation9 + $0x18] sm:$0xf]
    %v378 = vld [vmem:[#allocation9 + $0x1c] sm:$0xf]
    %v379 = vld [vmem:[#allocation9 + $0x20] sm:$0xf]
    %v380 = vld [vmem:[#allocation9 + $0x24] sm:$0xf]
    %v381 = vld [vmem:[#allocation9 + $0x28] sm:$0xf]
    %v382 = vld [vmem:[#allocation9 + $0x2c] sm:$0xf]
    %v383 = vld [vmem:[#allocation9 + $0x30] sm:$0xf]
    %v384 = vld [vmem:[#allocation9 + $0x34] sm:$0xf]
    %v385 = vld [vmem:[#allocation9 + $0x38] sm:$0xf]
    %v386 = vld [vmem:[#allocation9 + $0x3c] sm:$0xf]
    %v387 = vld [vmem:[#allocation10] sm:$0x1]
    %v389 = vlaneseq
    %v390 = vshrl.u32 %v389, 7
    %v391 = vsub.s32 0, %v390
    %v392 = vrot.slane %v387, %v391
    %v410 = vunpack.c.l.b16 %v371
    %v411 = vunpack.c.l.b16 %v372
    %v412 = vunpack.c.l.b16 %v373
    %v413 = vunpack.c.l.b16 %v374
    %v414 = vunpack.c.l.b16 %v375
    %v415 = vunpack.c.l.b16 %v376
    %v416 = vunpack.c.l.b16 %v377
    %v417 = vunpack.c.l.b16 %v378
    %v418 = vunpack.c.l.b16 %v379
    %v419 = vunpack.c.l.b16 %v380
    %v420 = vunpack.c.l.b16 %v381
    %v421 = vunpack.c.l.b16 %v382
    %v422 = vunpack.c.l.b16 %v383
    %v423 = vunpack.c.l.b16 %v384
    %v424 = vunpack.c.l.b16 %v385
    %v425 = vunpack.c.l.b16 %v386
    %v426 = vpack.c.b16 %v411, %v410
    %v427 = vpack.c.b16 %v413, %v412
    %v428 = vpack.c.b16 %v415, %v414
    %v429 = vpack.c.b16 %v417, %v416
    %v430 = vpack.c.b16 %v419, %v418
    %v431 = vpack.c.b16 %v421, %v420
    %v432 = vpack.c.b16 %v423, %v422
    %v433 = vpack.c.b16 %v425, %v424
    %442 = vmatprep.subr.bf16.mxu0 0
    %443 = vmatpush1.bf16.msra.mxu0 %v426
    %444 = vmatprep.subr.bf16.mxu0 0
    %445 = vmatpush1.bf16.msra.mxu0 %v427
    %446 = vmatprep.subr.bf16.mxu0 0
    %447 = vmatpush1.bf16.msra.mxu0 %v428
    %448 = vmatprep.subr.bf16.mxu0 0
    %449 = vmatpush1.bf16.msra.mxu0 %v429
    %450 = vmatprep.subr.bf16.mxu0 0
    %451 = vmatpush1.bf16.msra.mxu0 %v430
    %452 = vmatprep.subr.bf16.mxu0 0
    %453 = vmatpush1.bf16.msra.mxu0 %v431
    %454 = vmatprep.subr.bf16.mxu0 0
    %455 = vmatpush1.bf16.msra.mxu0 %v432
    %456 = vmatprep.subr.bf16.mxu0 0
    %457 = vmatpush1.bf16.msra.mxu0 %v433
    %458 = vmatprep.subr.bf16.mxu0 0
    %459 = vmatpush1.bf16.msra.mxu0 0
    %460 = vmatprep.subr.bf16.mxu0 0
    %461 = vmatpush1.bf16.msra.mxu0 0
    %462 = vmatprep.subr.bf16.mxu0 0
    %463 = vmatpush1.bf16.msra.mxu0 0
    %464 = vmatprep.subr.bf16.mxu0 0
    %465 = vmatpush1.bf16.msra.mxu0 0
    %466 = vmatprep.subr.bf16.mxu0 0
    %467 = vmatpush1.bf16.msra.mxu0 0
    %468 = vmatprep.subr.bf16.mxu0 0
    %469 = vmatpush1.bf16.msra.mxu0 0
    %470 = vmatprep.subr.bf16.mxu0 0
    %471 = vmatpush1.bf16.msra.mxu0 0
    %472 = vmatprep.subr.bf16.mxu0 0
    %473 = vmatpush1.bf16.msra.mxu0 0
    %474 = vmatprep.mubr.bf16.mxu0 0
    %475 = vmatmul.mubr.bf16.gmra.mrb[0].mxu0 %v370
    %v476 = vpop.f32.mrb[0].mxu0
    %v477 = vadd.f32 %v392, %v476
    %v478 = vpop.f32.mrb[0].mxu0
    %v479 = vpop.f32.mrb[0].mxu0
    %v480 = vpop.f32.mrb[0].mxu0
    %481 = vdwg.mxu0
    %v482 = vld [vmem:[%s2] sm:$0xf]
    %v483 = vld [vmem:[%s10] sm:$0xff]
    %v485 = vsel %vm128, %v482, 0
    %487 = vmatprep.subr.mxu0 0.0
    %488 = vmatpush1.msra.mxu0 %v483
    %489 = vmatprep.subr.mxu0 0.0
    %490 = vmatpush1.msra.mxu0 0.0
    %491 = vmatprep.subr.mxu0 0.0
    %492 = vmatpush1.msra.mxu0 0.0
    %493 = vmatprep.subr.mxu0 0.0
    %494 = vmatpush1.msra.mxu0 0.0
    %495 = vmatprep.subr.mxu0 0.0
    %496 = vmatpush1.msra.mxu0 0.0
    %497 = vmatprep.subr.mxu0 0.0
    %498 = vmatpush1.msra.mxu0 0.0
    %499 = vmatprep.subr.mxu0 0.0
    %500 = vmatpush1.msra.mxu0 0.0
    %501 = vmatprep.subr.mxu0 0.0
    %502 = vmatpush1.msra.mxu0 0.0
    %503 = vmatprep.subr.mxu0 0.0
    %504 = vmatpush1.msra.mxu0 0.0
    %505 = vmatprep.subr.mxu0 0.0
    %506 = vmatpush1.msra.mxu0 0.0
    %507 = vmatprep.subr.mxu0 0.0
    %508 = vmatpush1.msra.mxu0 0.0
    %509 = vmatprep.subr.mxu0 0.0
    %510 = vmatpush1.msra.mxu0 0.0
    %511 = vmatprep.subr.mxu0 0.0
    %512 = vmatpush1.msra.mxu0 0.0
    %513 = vmatprep.subr.mxu0 0.0
    %514 = vmatpush1.msra.mxu0 0.0
    %515 = vmatprep.subr.mxu0 0.0
    %516 = vmatpush1.msra.mxu0 0.0
    %517 = vmatprep.subr.mxu0 0.0
    %518 = vmatpush1.msra.mxu0 0.0
    %519 = vmatprep.subr.mxu0 0.0
    %520 = vmatpush1.msra.mxu0 0.0
    %521 = vmatprep.subr.mxu0 0.0
    %522 = vmatpush1.msra.mxu0 0.0
    %523 = vmatprep.subr.mxu0 0.0
    %524 = vmatpush1.msra.mxu0 0.0
    %525 = vmatprep.subr.mxu0 0.0
    %526 = vmatpush1.msra.mxu0 0.0
    %527 = vmatprep.subr.mxu0 0.0
    %528 = vmatpush1.msra.mxu0 0.0
    %529 = vmatprep.subr.mxu0 0.0
    %530 = vmatpush1.msra.mxu0 0.0
    %531 = vmatprep.subr.mxu0 0.0
    %532 = vmatpush1.msra.mxu0 0.0
    %533 = vmatprep.subr.mxu0 0.0
    %534 = vmatpush1.msra.mxu0 0.0
    %535 = vmatprep.subr.mxu0 0.0
    %536 = vmatpush1.msra.mxu0 0.0
    %537 = vmatprep.subr.mxu0 0.0
    %538 = vmatpush1.msra.mxu0 0.0
    %539 = vmatprep.subr.mxu0 0.0
    %540 = vmatpush1.msra.mxu0 0.0
    %541 = vmatprep.subr.mxu0 0.0
    %542 = vmatpush1.msra.mxu0 0.0
    %543 = vmatprep.subr.mxu0 0.0
    %544 = vmatpush1.msra.mxu0 0.0
    %545 = vmatprep.subr.mxu0 0.0
    %546 = vmatpush1.msra.mxu0 0.0
    %547 = vmatprep.subr.mxu0 0.0
    %548 = vmatpush1.msra.mxu0 0.0
    %549 = vmatprep.subr.mxu0 0.0
    %550 = vmatpush1.msra.mxu0 0.0
    %551 = vmatprep.mubr.f32.mxu0 0.0
    %552 = vmatmul.mubr.f32.gmra.mrb[0].mxu0 %v485
    %v553 = vpop.f32.mrb[0].mxu0
    %v554 = vadd.f32 0.0, %v553
    %v555 = vpop.f32.mrb[0].mxu0
    %556 = vdwg.mxu0
    %557 = vrot.lane.b32.xlu0 %v477, 120
    %v558 = vpop.permute.xlu0 %557
    %v559 = vmul.f32 %v558, 0.5
    %v560 = vmul.f32 %v559, 1.442695
    %v561 = vpow.pop %v560
    %v562 = vmul.f32 %v554, %v561
    %v563 = vadd.f32 %v562, %v477
    %564 = vrot.lane.b32.xlu0 %v563, 16
    %v565 = vpop.permute.xlu0 %564
    %v566 = vlaneseq
    %v567 = vand.u32 %v566, 127
    %vm568 = vcmp.lt.s32.totalorder %v567, 16
    %v569 = vsel %vm568, %v477, %v565
    %570 = vst [vmem:[%s11] sm:$0xf] %v569
    // Predicated region
    $region70: #{encoder_forward.1} parent=1 // pred_check
      _
    $region71: #{encoder_forward.1} parent=1 // pred_check_branch
      %572 = sbr.rel (0) target = $region73
    $region72: #{encoder_forward.1} parent=1 // pred_region
      _
    $region73: #{encoder_forward.1} parent=1 // pred_fallthru
      _
    // Predicated region
    $region74: #{encoder_forward.1} parent=1 // pred_check
      _
    $region75: #{encoder_forward.1} parent=1 // pred_check_branch
      %574 = sbr.rel (0) target = $region77
    $region76: #{encoder_forward.1} parent=1 // pred_region
      _
    $region77: #{encoder_forward.1} parent=1 // pred_fallthru
      _
    %575 = vsyncpa [#allocation3], 1
    %576 = vsyncpa [#allocation5], 1
    %577 = vsyncpa [#allocation8], 1
    %578 = vsyncpa [#allocation11], 1

</llo_original>
